<compile_context>
chip_gen: v7x
topology: tpu7x:2x2x1
jax: 0.10.0
libtpu: 0.0.40
codegen_flags: <defaults>
</compile_context>

<pallas_src>
import numpy as np
import jax
import jax.numpy as jnp
from jax import lax
from jax.experimental import pallas as pl
from jax.experimental.pallas import tpu as pltpu

ALPHA = 1.5
KERNEL_SIZE = 5
VOXEL_SPACING = (1.0, 1.0, 1.0)
DT_SCALE_2D = 1.0  # dim_config[2]['dt_scale']


def _dt_conv_weights(K, spacing, alpha):
    # Deterministic "parameter" init, identical to _create_2d_kernel.
    xs = np.linspace(-1.0, 1.0, K) * spacing[0]
    ys = np.linspace(-1.0, 1.0, K) * spacing[1]
    xx, yy = np.meshgrid(xs, ys, indexing="ij")
    return (-(xx ** 2 + yy ** 2) * alpha).astype(np.float32)  # (K, K)


def _make_fused_kernel(B, H, W, K, alpha, spacing, dt_scale):
    P = K // 2
    Hp, Wp = H + K - 1, W + K - 1
    # Additively separable weights: w[i, j] = a[i] + b[j]  (baked-in Python floats).
    xs = np.linspace(-1.0, 1.0, K) * spacing[0]
    ys = np.linspace(-1.0, 1.0, K) * spacing[1]
    a = [float(-alpha * v * v) for v in xs]   # sublane-axis (i / H) weights
    b = [float(-alpha * v * v) for v in ys]   # lane-axis   (j / W) weights

    def kernel(logits_ref, target_ref, out_ref, pad_ref):
        # logits_ref, target_ref: (B, H, W) f32 in VMEM
        # out_ref:                (1, 1)    f32 in SMEM
        # pad_ref:                (B, Hp, Wp) f32 VMEM scratch (reused twice)
        x = logits_ref[...]
        sig = 1.0 / (1.0 + jnp.exp(-x))                        # sigmoid, fused in-kernel
        tmask = (target_ref[...] > 0.0).astype(jnp.float32)    # target mask
        pmask = (sig > 0.0).astype(jnp.float32)                # pred mask (kept for fidelity)

        def dist_transform(mask):
            # dt = clamp(conv2d(1 - pad(mask, P, value=0), Kdt), min=0) * dt_scale
            pad_ref[...] = jnp.ones((B, Hp, Wp), jnp.float32)          # pad ring -> 1
            pad_ref[:, P:P + H, P:P + W] = 1.0 - mask                  # interior -> 1 - mask
            padded = pad_ref[...]
            # Lane-axis (j) partial sums, hoisted once: rows[b,h',w] = sum_j padded[b,h',w+j]
            rows = padded[:, :, 0:W]
            for j in range(1, K):
                rows = rows + padded[:, :, j:j + W]                    # (B, Hp, W)
            # Sublane-axis (i) partial sums: cols[b,h,w'] = sum_i padded[b,h+i,w']
            cols = padded[:, 0:H, :]
            for i in range(1, K):
                cols = cols + padded[:, i:i + H, :]                    # (B, H, Wp)
            # conv[h,w] = sum_i a_i * rows[h+i, w] + sum_j b_j * cols[h, w+j]
            acc = a[0] * rows[:, 0:H, :]
            for i in range(1, K):
                acc = acc + a[i] * rows[:, i:i + H, :]
            for j in range(K):
                acc = acc + b[j] * cols[:, :, j:j + W]
            return jnp.maximum(acc, 0.0) * dt_scale                    # (B, H, W)

        dt_t = dist_transform(tmask)          # dt(target_mask)
        # hd_t2s branch: provably zero for finite logits (sigmoid > 0 always),
        # kept to preserve the original module's forward semantics exactly.
        dt_p = dist_transform(1.0 - pmask)    # dt(1 - pred_mask)

        # Exact O(B) factorization of the O(B^2) cross-batch max (sig>=0, dt>=0).
        dt_t_max = dt_t[0:1]
        for bb in range(1, B):
            dt_t_max = jnp.maximum(dt_t_max, dt_t[bb:bb + 1])          # (1, H, W)

        s2t = sig * dt_t_max                  # (B, H, W)
        t2s = tmask * dt_p                    # (B, H, W)

        total = jnp.float32(0.0)
        for bb in range(B):
            total = total + jnp.max(s2t[bb:bb + 1]) + jnp.max(t2s[bb:bb + 1])
        out_ref[0, 0] = total / jnp.float32(B)

    return kernel


def auto_hausdorff_dt_loss(pred_logits, target, *, alpha=ALPHA,
                           kernel_size=KERNEL_SIZE, voxel_spacing=VOXEL_SPACING):
    B, C, H, W = pred_logits.shape
    assert C == 1 and target.shape == pred_logits.shape
    K = kernel_size
    Hp, Wp = H + K - 1, W + K - 1

    logits = pred_logits.reshape(B, H, W).astype(jnp.float32)   # metadata-only squeeze
    targ = target.reshape(B, H, W).astype(jnp.float32)

    res = pl.pallas_call(
        _make_fused_kernel(B, H, W, K, alpha, voxel_spacing[:2], DT_SCALE_2D),
        out_shape=jax.ShapeDtypeStruct((1, 1), jnp.float32),
        in_specs=[pl.BlockSpec(memory_space=pltpu.MemorySpace.VMEM)] * 2,
        out_specs=pl.BlockSpec(memory_space=pltpu.MemorySpace.SMEM),
        scratch_shapes=[pltpu.VMEM((B, Hp, Wp), jnp.float32)],
    )(logits, targ)
    return res[0, 0]


def _reference(pred_logits, target, alpha=ALPHA, K=KERNEL_SIZE, spacing=VOXEL_SPACING):
    # Pure-JAX reference mirroring the PyTorch forward, for validation.
    B, _, H, W = pred_logits.shape
    pad = K // 2
    w2d = jnp.asarray(_dt_conv_weights(K, spacing[:2], alpha))
    tm = (target[:, 0] > 0).astype(jnp.float32)
    sig = jax.nn.sigmoid(pred_logits.astype(jnp.float32))
    pm = (sig[:, 0] > 0).astype(jnp.float32)

    def dt(mask):
        p = 1.0 - jnp.pad(mask, ((0, 0), (pad, pad), (pad, pad)))
        out = lax.conv_general_dilated(
            p[:, None], w2d[None, None], (1, 1), "VALID",
            dimension_numbers=("NCHW", "OIHW", "NCHW"),
            precision=lax.Precision.HIGHEST)
        return jnp.maximum(out[:, 0], 0.0) * DT_SCALE_2D

    dtt = dt(tm)
    dtp = dt(1.0 - pm)
    hd_s2t = jnp.max((sig * dtt[None]).reshape(B, -1), axis=1)   # (B,1,H,W)*(1,B,H,W)
    hd_t2s = jnp.max((tm * dtp).reshape(B, -1), axis=1)
    return jnp.mean(hd_s2t + hd_t2s)


if __name__ == "__main__":
    key = jax.random.PRNGKey(0)
    k1, k2 = jax.random.split(key)
    B, C, H, W = 2, 1, 16, 16
    pred_logits = jax.random.normal(k1, (B, C, H, W), dtype=jnp.float32)
    target = (jax.random.uniform(k2, (B, C, H, W)) > 0.7).astype(jnp.float32)

    loss_fn = jax.jit(auto_hausdorff_dt_loss)
    loss = jax.block_until_ready(loss_fn(pred_logits, target))
    ref = jax.block_until_ready(_reference(pred_logits, target))
    assert np.allclose(np.asarray(loss), np.asarray(ref), rtol=1e-5, atol=1e-5), (loss, ref)
    print("KERNEL_OK")
</pallas_src>

<mosaic_0001>
module attributes {stable_mosaic.version = 11 : i64} {
  func.func @kernel(%arg0: memref<2x16x16xf32, #tpu.memory_space<vmem>>, %arg1: memref<2x16x16xf32, #tpu.memory_space<vmem>>, %arg2: memref<1x1xf32, #tpu.memory_space<smem>>, %arg3: memref<2x20x20xf32, #tpu.memory_space<vmem>>) attributes {dimension_semantics = [], scalar_prefetch = 0 : i64, scratch_operands = 1 : i64, tpu.core_type = #tpu.core_type<tc>} {
    %c0 = arith.constant 0 : index
    %c0_0 = arith.constant 0 : index
    %c0_1 = arith.constant 0 : index
    %0 = vector.load %arg0[%c0, %c0_0, %c0_1] : memref<2x16x16xf32, #tpu.memory_space<vmem>>, vector<2x16x16xf32>
    %cst = arith.constant 0.000000e+00 : f32
    %1 = vector.broadcast %cst : f32 to vector<2x16x16xf32>
    %2 = arith.subf %1, %0 : vector<2x16x16xf32>
    %3 = math.exp %2 : vector<2x16x16xf32>
    %cst_2 = arith.constant 1.000000e+00 : f32
    %4 = vector.broadcast %cst_2 : f32 to vector<2x16x16xf32>
    %5 = arith.addf %4, %3 : vector<2x16x16xf32>
    %cst_3 = arith.constant 1.000000e+00 : f32
    %6 = vector.broadcast %cst_3 : f32 to vector<2x16x16xf32>
    %7 = arith.divf %6, %5 : vector<2x16x16xf32>
    %c0_4 = arith.constant 0 : index
    %c0_5 = arith.constant 0 : index
    %c0_6 = arith.constant 0 : index
    %8 = vector.load %arg1[%c0_4, %c0_5, %c0_6] : memref<2x16x16xf32, #tpu.memory_space<vmem>>, vector<2x16x16xf32>
    %cst_7 = arith.constant 0.000000e+00 : f32
    %9 = vector.broadcast %cst_7 : f32 to vector<2x16x16xf32>
    %10 = arith.cmpf ogt, %8, %9 : vector<2x16x16xf32>
    %11 = arith.extui %10 : vector<2x16x16xi1> to vector<2x16x16xi32>
    %12 = arith.sitofp %11 : vector<2x16x16xi32> to vector<2x16x16xf32>
    %cst_8 = arith.constant 0.000000e+00 : f32
    %13 = vector.broadcast %cst_8 : f32 to vector<2x16x16xf32>
    %14 = arith.cmpf ogt, %7, %13 : vector<2x16x16xf32>
    %15 = arith.extui %14 : vector<2x16x16xi1> to vector<2x16x16xi32>
    %16 = arith.sitofp %15 : vector<2x16x16xi32> to vector<2x16x16xf32>
    %cst_9 = arith.constant 1.000000e+00 : f32
    %17 = vector.broadcast %cst_9 : f32 to vector<2x20x20xf32>
    %c0_10 = arith.constant 0 : index
    %c0_11 = arith.constant 0 : index
    %c0_12 = arith.constant 0 : index
    %18 = vector.load %arg3[%c0_10, %c0_11, %c0_12] : memref<2x20x20xf32, #tpu.memory_space<vmem>>, vector<2x20x20xf32>
    tpu.vector_store %arg3[%c0_10, %c0_11, %c0_12], %17 {strides = array<i32>} : memref<2x20x20xf32, #tpu.memory_space<vmem>>, vector<2x20x20xf32>,
    %cst_13 = arith.constant 1.000000e+00 : f32
    %19 = vector.broadcast %cst_13 : f32 to vector<2x16x16xf32>
    %20 = arith.subf %19, %12 : vector<2x16x16xf32>
    %c0_14 = arith.constant 0 : index
    %c2 = arith.constant 2 : index
    %c2_15 = arith.constant 2 : index
    %21 = vector.load %arg3[%c0_14, %c2, %c2_15] : memref<2x20x20xf32, #tpu.memory_space<vmem>>, vector<2x16x16xf32>
    tpu.vector_store %arg3[%c0_14, %c2, %c2_15], %20 {strides = array<i32>} : memref<2x20x20xf32, #tpu.memory_space<vmem>>, vector<2x16x16xf32>,
    %c0_16 = arith.constant 0 : index
    %c0_17 = arith.constant 0 : index
    %c0_18 = arith.constant 0 : index
    %22 = vector.load %arg3[%c0_16, %c0_17, %c0_18] : memref<2x20x20xf32, #tpu.memory_space<vmem>>, vector<2x20x20xf32>
    %23 = vector.extract_strided_slice %22 {offsets = [0, 0, 0], sizes = [2, 20, 16], strides = [1, 1, 1]} : vector<2x20x20xf32> to vector<2x20x16xf32>
    %24 = vector.extract_strided_slice %22 {offsets = [0, 0, 1], sizes = [2, 20, 16], strides = [1, 1, 1]} : vector<2x20x20xf32> to vector<2x20x16xf32>
    %25 = arith.addf %23, %24 : vector<2x20x16xf32>
    %26 = vector.extract_strided_slice %22 {offsets = [0, 0, 2], sizes = [2, 20, 16], strides = [1, 1, 1]} : vector<2x20x20xf32> to vector<2x20x16xf32>
    %27 = arith.addf %25, %26 : vector<2x20x16xf32>
    %28 = vector.extract_strided_slice %22 {offsets = [0, 0, 3], sizes = [2, 20, 16], strides = [1, 1, 1]} : vector<2x20x20xf32> to vector<2x20x16xf32>
    %29 = arith.addf %27, %28 : vector<2x20x16xf32>
    %30 = vector.extract_strided_slice %22 {offsets = [0, 0, 4], sizes = [2, 20, 16], strides = [1, 1, 1]} : vector<2x20x20xf32> to vector<2x20x16xf32>
    %31 = arith.addf %29, %30 : vector<2x20x16xf32>
    %32 = vector.extract_strided_slice %22 {offsets = [0, 0, 0], sizes = [2, 16, 20], strides = [1, 1, 1]} : vector<2x20x20xf32> to vector<2x16x20xf32>
    %33 = vector.extract_strided_slice %22 {offsets = [0, 1, 0], sizes = [2, 16, 20], strides = [1, 1, 1]} : vector<2x20x20xf32> to vector<2x16x20xf32>
    %34 = arith.addf %32, %33 : vector<2x16x20xf32>
    %35 = vector.extract_strided_slice %22 {offsets = [0, 2, 0], sizes = [2, 16, 20], strides = [1, 1, 1]} : vector<2x20x20xf32> to vector<2x16x20xf32>
    %36 = arith.addf %34, %35 : vector<2x16x20xf32>
    %37 = vector.extract_strided_slice %22 {offsets = [0, 3, 0], sizes = [2, 16, 20], strides = [1, 1, 1]} : vector<2x20x20xf32> to vector<2x16x20xf32>
    %38 = arith.addf %36, %37 : vector<2x16x20xf32>
    %39 = vector.extract_strided_slice %22 {offsets = [0, 4, 0], sizes = [2, 16, 20], strides = [1, 1, 1]} : vector<2x20x20xf32> to vector<2x16x20xf32>
    %40 = arith.addf %38, %39 : vector<2x16x20xf32>
    %41 = vector.extract_strided_slice %31 {offsets = [0, 0, 0], sizes = [2, 16, 16], strides = [1, 1, 1]} : vector<2x20x16xf32> to vector<2x16x16xf32>
    %cst_19 = arith.constant -1.500000e+00 : f32
    %42 = vector.broadcast %cst_19 : f32 to vector<2x16x16xf32>
    %43 = arith.mulf %42, %41 : vector<2x16x16xf32>
    %44 = vector.extract_strided_slice %31 {offsets = [0, 1, 0], sizes = [2, 16, 16], strides = [1, 1, 1]} : vector<2x20x16xf32> to vector<2x16x16xf32>
    %cst_20 = arith.constant -3.750000e-01 : f32
    %45 = vector.broadcast %cst_20 : f32 to vector<2x16x16xf32>
    %46 = arith.mulf %45, %44 : vector<2x16x16xf32>
    %47 = arith.addf %43, %46 : vector<2x16x16xf32>
    %48 = vector.extract_strided_slice %31 {offsets = [0, 2, 0], sizes = [2, 16, 16], strides = [1, 1, 1]} : vector<2x20x16xf32> to vector<2x16x16xf32>
    %cst_21 = arith.constant -0.000000e+00 : f32
    %49 = vector.broadcast %cst_21 : f32 to vector<2x16x16xf32>
    %50 = arith.mulf %49, %48 : vector<2x16x16xf32>
    %51 = arith.addf %47, %50 : vector<2x16x16xf32>
    %52 = vector.extract_strided_slice %31 {offsets = [0, 3, 0], sizes = [2, 16, 16], strides = [1, 1, 1]} : vector<2x20x16xf32> to vector<2x16x16xf32>
    %cst_22 = arith.constant -3.750000e-01 : f32
    %53 = vector.broadcast %cst_22 : f32 to vector<2x16x16xf32>
    %54 = arith.mulf %53, %52 : vector<2x16x16xf32>
    %55 = arith.addf %51, %54 : vector<2x16x16xf32>
    %56 = vector.extract_strided_slice %31 {offsets = [0, 4, 0], sizes = [2, 16, 16], strides = [1, 1, 1]} : vector<2x20x16xf32> to vector<2x16x16xf32>
    %cst_23 = arith.constant -1.500000e+00 : f32
    %57 = vector.broadcast %cst_23 : f32 to vector<2x16x16xf32>
    %58 = arith.mulf %57, %56 : vector<2x16x16xf32>
    %59 = arith.addf %55, %58 : vector<2x16x16xf32>
    %60 = vector.extract_strided_slice %40 {offsets = [0, 0, 0], sizes = [2, 16, 16], strides = [1, 1, 1]} : vector<2x16x20xf32> to vector<2x16x16xf32>
    %cst_24 = arith.constant -1.500000e+00 : f32
    %61 = vector.broadcast %cst_24 : f32 to vector<2x16x16xf32>
    %62 = arith.mulf %61, %60 : vector<2x16x16xf32>
    %63 = arith.addf %59, %62 : vector<2x16x16xf32>
    %64 = vector.extract_strided_slice %40 {offsets = [0, 0, 1], sizes = [2, 16, 16], strides = [1, 1, 1]} : vector<2x16x20xf32> to vector<2x16x16xf32>
    %cst_25 = arith.constant -3.750000e-01 : f32
    %65 = vector.broadcast %cst_25 : f32 to vector<2x16x16xf32>
    %66 = arith.mulf %65, %64 : vector<2x16x16xf32>
    %67 = arith.addf %63, %66 : vector<2x16x16xf32>
    %68 = vector.extract_strided_slice %40 {offsets = [0, 0, 2], sizes = [2, 16, 16], strides = [1, 1, 1]} : vector<2x16x20xf32> to vector<2x16x16xf32>
    %cst_26 = arith.constant -0.000000e+00 : f32
    %69 = vector.broadcast %cst_26 : f32 to vector<2x16x16xf32>
    %70 = arith.mulf %69, %68 : vector<2x16x16xf32>
    %71 = arith.addf %67, %70 : vector<2x16x16xf32>
    %72 = vector.extract_strided_slice %40 {offsets = [0, 0, 3], sizes = [2, 16, 16], strides = [1, 1, 1]} : vector<2x16x20xf32> to vector<2x16x16xf32>
    %cst_27 = arith.constant -3.750000e-01 : f32
    %73 = vector.broadcast %cst_27 : f32 to vector<2x16x16xf32>
    %74 = arith.mulf %73, %72 : vector<2x16x16xf32>
    %75 = arith.addf %71, %74 : vector<2x16x16xf32>
    %76 = vector.extract_strided_slice %40 {offsets = [0, 0, 4], sizes = [2, 16, 16], strides = [1, 1, 1]} : vector<2x16x20xf32> to vector<2x16x16xf32>
    %cst_28 = arith.constant -1.500000e+00 : f32
    %77 = vector.broadcast %cst_28 : f32 to vector<2x16x16xf32>
    %78 = arith.mulf %77, %76 : vector<2x16x16xf32>
    %79 = arith.addf %75, %78 : vector<2x16x16xf32>
    %cst_29 = arith.constant 0.000000e+00 : f32
    %80 = vector.broadcast %cst_29 : f32 to vector<2x16x16xf32>
    %81 = arith.maximumf %79, %80 : vector<2x16x16xf32>
    %cst_30 = arith.constant 1.000000e+00 : f32
    %82 = vector.broadcast %cst_30 : f32 to vector<2x16x16xf32>
    %83 = arith.mulf %81, %82 : vector<2x16x16xf32>
    %cst_31 = arith.constant 1.000000e+00 : f32
    %84 = vector.broadcast %cst_31 : f32 to vector<2x16x16xf32>
    %85 = arith.subf %84, %16 : vector<2x16x16xf32>
    %cst_32 = arith.constant 1.000000e+00 : f32
    %86 = vector.broadcast %cst_32 : f32 to vector<2x20x20xf32>
    %c0_33 = arith.constant 0 : index
    %c0_34 = arith.constant 0 : index
    %c0_35 = arith.constant 0 : index
    %87 = vector.load %arg3[%c0_33, %c0_34, %c0_35] : memref<2x20x20xf32, #tpu.memory_space<vmem>>, vector<2x20x20xf32>
    tpu.vector_store %arg3[%c0_33, %c0_34, %c0_35], %86 {strides = array<i32>} : memref<2x20x20xf32, #tpu.memory_space<vmem>>, vector<2x20x20xf32>,
    %cst_36 = arith.constant 1.000000e+00 : f32
    %88 = vector.broadcast %cst_36 : f32 to vector<2x16x16xf32>
    %89 = arith.subf %88, %85 : vector<2x16x16xf32>
    %c0_37 = arith.constant 0 : index
    %c2_38 = arith.constant 2 : index
    %c2_39 = arith.constant 2 : index
    %90 = vector.load %arg3[%c0_37, %c2_38, %c2_39] : memref<2x20x20xf32, #tpu.memory_space<vmem>>, vector<2x16x16xf32>
    tpu.vector_store %arg3[%c0_37, %c2_38, %c2_39], %89 {strides = array<i32>} : memref<2x20x20xf32, #tpu.memory_space<vmem>>, vector<2x16x16xf32>,
    %c0_40 = arith.constant 0 : index
    %c0_41 = arith.constant 0 : index
    %c0_42 = arith.constant 0 : index
    %91 = vector.load %arg3[%c0_40, %c0_41, %c0_42] : memref<2x20x20xf32, #tpu.memory_space<vmem>>, vector<2x20x20xf32>
    %92 = vector.extract_strided_slice %91 {offsets = [0, 0, 0], sizes = [2, 20, 16], strides = [1, 1, 1]} : vector<2x20x20xf32> to vector<2x20x16xf32>
    %93 = vector.extract_strided_slice %91 {offsets = [0, 0, 1], sizes = [2, 20, 16], strides = [1, 1, 1]} : vector<2x20x20xf32> to vector<2x20x16xf32>
    %94 = arith.addf %92, %93 : vector<2x20x16xf32>
    %95 = vector.extract_strided_slice %91 {offsets = [0, 0, 2], sizes = [2, 20, 16], strides = [1, 1, 1]} : vector<2x20x20xf32> to vector<2x20x16xf32>
    %96 = arith.addf %94, %95 : vector<2x20x16xf32>
    %97 = vector.extract_strided_slice %91 {offsets = [0, 0, 3], sizes = [2, 20, 16], strides = [1, 1, 1]} : vector<2x20x20xf32> to vector<2x20x16xf32>
    %98 = arith.addf %96, %97 : vector<2x20x16xf32>
    %99 = vector.extract_strided_slice %91 {offsets = [0, 0, 4], sizes = [2, 20, 16], strides = [1, 1, 1]} : vector<2x20x20xf32> to vector<2x20x16xf32>
    %100 = arith.addf %98, %99 : vector<2x20x16xf32>
    %101 = vector.extract_strided_slice %91 {offsets = [0, 0, 0], sizes = [2, 16, 20], strides = [1, 1, 1]} : vector<2x20x20xf32> to vector<2x16x20xf32>
    %102 = vector.extract_strided_slice %91 {offsets = [0, 1, 0], sizes = [2, 16, 20], strides = [1, 1, 1]} : vector<2x20x20xf32> to vector<2x16x20xf32>
    %103 = arith.addf %101, %102 : vector<2x16x20xf32>
    %104 = vector.extract_strided_slice %91 {offsets = [0, 2, 0], sizes = [2, 16, 20], strides = [1, 1, 1]} : vector<2x20x20xf32> to vector<2x16x20xf32>
    %105 = arith.addf %103, %104 : vector<2x16x20xf32>
    %106 = vector.extract_strided_slice %91 {offsets = [0, 3, 0], sizes = [2, 16, 20], strides = [1, 1, 1]} : vector<2x20x20xf32> to vector<2x16x20xf32>
    %107 = arith.addf %105, %106 : vector<2x16x20xf32>
    %108 = vector.extract_strided_slice %91 {offsets = [0, 4, 0], sizes = [2, 16, 20], strides = [1, 1, 1]} : vector<2x20x20xf32> to vector<2x16x20xf32>
    %109 = arith.addf %107, %108 : vector<2x16x20xf32>
    %110 = vector.extract_strided_slice %100 {offsets = [0, 0, 0], sizes = [2, 16, 16], strides = [1, 1, 1]} : vector<2x20x16xf32> to vector<2x16x16xf32>
    %cst_43 = arith.constant -1.500000e+00 : f32
    %111 = vector.broadcast %cst_43 : f32 to vector<2x16x16xf32>
    %112 = arith.mulf %111, %110 : vector<2x16x16xf32>
    %113 = vector.extract_strided_slice %100 {offsets = [0, 1, 0], sizes = [2, 16, 16], strides = [1, 1, 1]} : vector<2x20x16xf32> to vector<2x16x16xf32>
    %cst_44 = arith.constant -3.750000e-01 : f32
    %114 = vector.broadcast %cst_44 : f32 to vector<2x16x16xf32>
    %115 = arith.mulf %114, %113 : vector<2x16x16xf32>
    %116 = arith.addf %112, %115 : vector<2x16x16xf32>
    %117 = vector.extract_strided_slice %100 {offsets = [0, 2, 0], sizes = [2, 16, 16], strides = [1, 1, 1]} : vector<2x20x16xf32> to vector<2x16x16xf32>
    %cst_45 = arith.constant -0.000000e+00 : f32
    %118 = vector.broadcast %cst_45 : f32 to vector<2x16x16xf32>
    %119 = arith.mulf %118, %117 : vector<2x16x16xf32>
    %120 = arith.addf %116, %119 : vector<2x16x16xf32>
    %121 = vector.extract_strided_slice %100 {offsets = [0, 3, 0], sizes = [2, 16, 16], strides = [1, 1, 1]} : vector<2x20x16xf32> to vector<2x16x16xf32>
    %cst_46 = arith.constant -3.750000e-01 : f32
    %122 = vector.broadcast %cst_46 : f32 to vector<2x16x16xf32>
    %123 = arith.mulf %122, %121 : vector<2x16x16xf32>
    %124 = arith.addf %120, %123 : vector<2x16x16xf32>
    %125 = vector.extract_strided_slice %100 {offsets = [0, 4, 0], sizes = [2, 16, 16], strides = [1, 1, 1]} : vector<2x20x16xf32> to vector<2x16x16xf32>
    %cst_47 = arith.constant -1.500000e+00 : f32
    %126 = vector.broadcast %cst_47 : f32 to vector<2x16x16xf32>
    %127 = arith.mulf %126, %125 : vector<2x16x16xf32>
    %128 = arith.addf %124, %127 : vector<2x16x16xf32>
    %129 = vector.extract_strided_slice %109 {offsets = [0, 0, 0], sizes = [2, 16, 16], strides = [1, 1, 1]} : vector<2x16x20xf32> to vector<2x16x16xf32>
    %cst_48 = arith.constant -1.500000e+00 : f32
    %130 = vector.broadcast %cst_48 : f32 to vector<2x16x16xf32>
    %131 = arith.mulf %130, %129 : vector<2x16x16xf32>
    %132 = arith.addf %128, %131 : vector<2x16x16xf32>
    %133 = vector.extract_strided_slice %109 {offsets = [0, 0, 1], sizes = [2, 16, 16], strides = [1, 1, 1]} : vector<2x16x20xf32> to vector<2x16x16xf32>
    %cst_49 = arith.constant -3.750000e-01 : f32
    %134 = vector.broadcast %cst_49 : f32 to vector<2x16x16xf32>
    %135 = arith.mulf %134, %133 : vector<2x16x16xf32>
    %136 = arith.addf %132, %135 : vector<2x16x16xf32>
    %137 = vector.extract_strided_slice %109 {offsets = [0, 0, 2], sizes = [2, 16, 16], strides = [1, 1, 1]} : vector<2x16x20xf32> to vector<2x16x16xf32>
    %cst_50 = arith.constant -0.000000e+00 : f32
    %138 = vector.broadcast %cst_50 : f32 to vector<2x16x16xf32>
    %139 = arith.mulf %138, %137 : vector<2x16x16xf32>
    %140 = arith.addf %136, %139 : vector<2x16x16xf32>
    %141 = vector.extract_strided_slice %109 {offsets = [0, 0, 3], sizes = [2, 16, 16], strides = [1, 1, 1]} : vector<2x16x20xf32> to vector<2x16x16xf32>
    %cst_51 = arith.constant -3.750000e-01 : f32
    %142 = vector.broadcast %cst_51 : f32 to vector<2x16x16xf32>
    %143 = arith.mulf %142, %141 : vector<2x16x16xf32>
    %144 = arith.addf %140, %143 : vector<2x16x16xf32>
    %145 = vector.extract_strided_slice %109 {offsets = [0, 0, 4], sizes = [2, 16, 16], strides = [1, 1, 1]} : vector<2x16x20xf32> to vector<2x16x16xf32>
    %cst_52 = arith.constant -1.500000e+00 : f32
    %146 = vector.broadcast %cst_52 : f32 to vector<2x16x16xf32>
    %147 = arith.mulf %146, %145 : vector<2x16x16xf32>
    %148 = arith.addf %144, %147 : vector<2x16x16xf32>
    %cst_53 = arith.constant 0.000000e+00 : f32
    %149 = vector.broadcast %cst_53 : f32 to vector<2x16x16xf32>
    %150 = arith.maximumf %148, %149 : vector<2x16x16xf32>
    %cst_54 = arith.constant 1.000000e+00 : f32
    %151 = vector.broadcast %cst_54 : f32 to vector<2x16x16xf32>
    %152 = arith.mulf %150, %151 : vector<2x16x16xf32>
    %153 = vector.extract_strided_slice %83 {offsets = [0, 0, 0], sizes = [1, 16, 16], strides = [1, 1, 1]} : vector<2x16x16xf32> to vector<1x16x16xf32>
    %154 = vector.extract_strided_slice %83 {offsets = [1, 0, 0], sizes = [1, 16, 16], strides = [1, 1, 1]} : vector<2x16x16xf32> to vector<1x16x16xf32>
    %155 = arith.maximumf %153, %154 : vector<1x16x16xf32>
    %156 = vector.broadcast %155 : vector<1x16x16xf32> to vector<2x16x16xf32>
    %157 = arith.mulf %7, %156 : vector<2x16x16xf32>
    %158 = arith.mulf %12, %152 : vector<2x16x16xf32>
    %159 = vector.extract_strided_slice %157 {offsets = [0, 0, 0], sizes = [1, 16, 16], strides = [1, 1, 1]} : vector<2x16x16xf32> to vector<1x16x16xf32>
    %160 = vector.shape_cast %159 : vector<1x16x16xf32> to vector<1x1x16x16xf32>
    %cst_55 = arith.constant dense<0xFF800000> : vector<1xf32>
    %161 = vector.multi_reduction <maximumf>, %160, %cst_55 [1, 2, 3] : vector<1x1x16x16xf32> to vector<1xf32>
    %162 = vector.shape_cast %161 : vector<1xf32> to vector<1x1x1x1xf32>
    %163 = vector.extract %162[0, 0, 0, 0] : f32 from vector<1x1x1x1xf32>
    %cst_56 = arith.constant 0.000000e+00 : f32
    %164 = arith.addf %cst_56, %163 : f32
    %165 = vector.extract_strided_slice %158 {offsets = [0, 0, 0], sizes = [1, 16, 16], strides = [1, 1, 1]} : vector<2x16x16xf32> to vector<1x16x16xf32>
    %166 = vector.shape_cast %165 : vector<1x16x16xf32> to vector<1x1x16x16xf32>
    %cst_57 = arith.constant dense<0xFF800000> : vector<1xf32>
    %167 = vector.multi_reduction <maximumf>, %166, %cst_57 [1, 2, 3] : vector<1x1x16x16xf32> to vector<1xf32>
    %168 = vector.shape_cast %167 : vector<1xf32> to vector<1x1x1x1xf32>
    %169 = vector.extract %168[0, 0, 0, 0] : f32 from vector<1x1x1x1xf32>
    %170 = arith.addf %164, %169 : f32
    %171 = vector.extract_strided_slice %157 {offsets = [1, 0, 0], sizes = [1, 16, 16], strides = [1, 1, 1]} : vector<2x16x16xf32> to vector<1x16x16xf32>
    %172 = vector.shape_cast %171 : vector<1x16x16xf32> to vector<1x1x16x16xf32>
    %cst_58 = arith.constant dense<0xFF800000> : vector<1xf32>
    %173 = vector.multi_reduction <maximumf>, %172, %cst_58 [1, 2, 3] : vector<1x1x16x16xf32> to vector<1xf32>
    %174 = vector.shape_cast %173 : vector<1xf32> to vector<1x1x1x1xf32>
    %175 = vector.extract %174[0, 0, 0, 0] : f32 from vector<1x1x1x1xf32>
    %176 = arith.addf %170, %175 : f32
    %177 = vector.extract_strided_slice %158 {offsets = [1, 0, 0], sizes = [1, 16, 16], strides = [1, 1, 1]} : vector<2x16x16xf32> to vector<1x16x16xf32>
    %178 = vector.shape_cast %177 : vector<1x16x16xf32> to vector<1x1x16x16xf32>
    %cst_59 = arith.constant dense<0xFF800000> : vector<1xf32>
    %179 = vector.multi_reduction <maximumf>, %178, %cst_59 [1, 2, 3] : vector<1x1x16x16xf32> to vector<1xf32>
    %180 = vector.shape_cast %179 : vector<1xf32> to vector<1x1x1x1xf32>
    %181 = vector.extract %180[0, 0, 0, 0] : f32 from vector<1x1x1x1xf32>
    %182 = arith.addf %176, %181 : f32
    %cst_60 = arith.constant 2.000000e+00 : f32
    %183 = arith.divf %182, %cst_60 : f32
    %c0_61 = arith.constant 0 : index
    %c0_62 = arith.constant 0 : index
    %184 = memref.load %arg2[%c0_61, %c0_62] : memref<1x1xf32, #tpu.memory_space<smem>>
    memref.store %183, %arg2[%c0_61, %c0_62] : memref<1x1xf32, #tpu.memory_space<smem>>
    return
  }
}

</mosaic_0001>

<llo_original>
// kernel: auto_hausdorff_dt_loss.1
$region0: #{auto_hausdorff_dt_loss.1}
  #allocation0 [shape = 'u32[]', space=smem, size = 0x4, offset = 0x4, fixed_abs, tag = 'smem constant byte address 0x4 - core index']
  #allocation1 [shape = 'u32[144,128]{1,0:T(1,128)}', space=vmem, size = 0x12000, scoped, tag = 'internal scratch']
  #allocation2 [shape = 'f32[2,20,20]{2,1,0:T(8,128)}', space=vmem, size = 0x6000, scoped, tag = 'scratch operand']
  %s0 = inlined_call_operand.hbm [shape: f32[2,16,16], index: 0, kind: input, shape index: {}]
  %s1 = inlined_call_operand.hbm [shape: f32[2,16,16], index: 1, kind: input, shape index: {}]
  %s2 = inlined_call_operand.hbm [shape: f32[1,1], index: 2, kind: output, shape index: {}]
  %s3 = sld [smem:[#allocation0]]
  $region26: #{auto_hausdorff_dt_loss.1} parent=0
    _
  %s5 = ssub.s32 1, %s3
  %s6 = scalar_select 0, %s5, %s3
  $region1: #{auto_hausdorff_dt_loss.1} parent=0
    #allocation3 [shape = 'u8[16384]{0}', space=vmem, size = 0x4000, scoped, tag = 'input window, operand 0, single buffered']
    #allocation4 [shape = 's32[1]{0}', space=sflag, size = 0x4, scoped, tag = 'scoped memory for auto_hausdorff_dt_loss.1']
    #allocation5 [shape = 's32[1]{0}', space=sflag, size = 0x4, scoped, tag = 'scoped memory for auto_hausdorff_dt_loss.1']
    #allocation6 [shape = 'u8[16384]{0}', space=vmem, size = 0x4000, scoped, tag = 'input window, operand 1, single buffered']
    #allocation7 [shape = 's32[1]{0}', space=sflag, size = 0x4, scoped, tag = 'scoped memory for auto_hausdorff_dt_loss.1']
    #allocation8 [shape = 'u8[512]{0}', space=smem, size = 0x200, scoped, tag = 'output window, operand 0, single buffered']
    %7 = vsyncpa [#allocation4], 0
    %8 = vsyncpa [#allocation7], 0
    %9 = vsyncpa [#allocation5], 0
    // Predicated region
    $region2: #{auto_hausdorff_dt_loss.1} parent=1 // pred_check
      _
    $region3: #{auto_hausdorff_dt_loss.1} parent=1 // pred_check_branch
      %11 = sbr.rel (0) target = $region5
    $region4: #{auto_hausdorff_dt_loss.1} parent=1 // pred_region
      %s13 = ssub.s32 512, 512
      %14 = vsyncadd [#allocation4], %s13
      %s15 = sshll.u32 [#allocation3], 4
      %s16 = int_to_ptr.vmem [resolvable:$true] %s15
      %21 = dma.hbm_to_vmem [thread:$0]  %s0, 512, %s16, [#allocation4], 128, 128, 8
    $region5: #{auto_hausdorff_dt_loss.1} parent=1 // pred_fallthru
      _
    // Predicated region
    $region6: #{auto_hausdorff_dt_loss.1} parent=1 // pred_check
      _
    $region7: #{auto_hausdorff_dt_loss.1} parent=1 // pred_check_branch
      %23 = sbr.rel (0) target = $region9
    $region8: #{auto_hausdorff_dt_loss.1} parent=1 // pred_region
      %s25 = ssub.s32 512, 512
      %26 = vsyncadd [#allocation7], %s25
      %s27 = sshll.u32 [#allocation6], 4
      %s28 = int_to_ptr.vmem [resolvable:$true] %s27
      %33 = dma.hbm_to_vmem [thread:$0]  %s1, 512, %s28, [#allocation7], 128, 128, 8
    $region9: #{auto_hausdorff_dt_loss.1} parent=1 // pred_fallthru
      _
    // Predicated region
    $region10: #{auto_hausdorff_dt_loss.1} parent=1 // pred_check
      _
    $region11: #{auto_hausdorff_dt_loss.1} parent=1 // pred_check_branch
      %35 = sbr.rel (0) target = $region13
    $region12: #{auto_hausdorff_dt_loss.1} parent=1 // pred_region
      %36 = dma.done [#allocation4], 512
    $region13: #{auto_hausdorff_dt_loss.1} parent=1 // pred_fallthru
      _
    // Predicated region
    $region14: #{auto_hausdorff_dt_loss.1} parent=1 // pred_check
      _
    $region15: #{auto_hausdorff_dt_loss.1} parent=1 // pred_check_branch
      %38 = sbr.rel (0) target = $region17
    $region16: #{auto_hausdorff_dt_loss.1} parent=1 // pred_region
      %39 = dma.done [#allocation7], 512
    $region17: #{auto_hausdorff_dt_loss.1} parent=1 // pred_fallthru
      _
    %v40 = vld [vmem:[#allocation3] sm:$0xff]
    %v41 = vld [vmem:[#allocation3 + $0x8] sm:$0xff]
    %v42 = vld [vmem:[#allocation3 + $0x10] sm:$0xff]
    %v43 = vld [vmem:[#allocation3 + $0x18] sm:$0xff]
    %v44 = vsub.f32 0.0, %v40
    %v45 = vsub.f32 0.0, %v41
    %v46 = vsub.f32 0.0, %v42
    %v47 = vsub.f32 0.0, %v43
    %v48 = vmul.f32 %v44, 1.442695
    %v49 = vpow.pop %v48
    %v50 = vmul.f32 %v45, 1.442695
    %v51 = vpow.pop %v50
    %v52 = vmul.f32 %v46, 1.442695
    %v53 = vpow.pop %v52
    %v54 = vmul.f32 %v47, 1.442695
    %v55 = vpow.pop %v54
    %v56 = vadd.f32 %v49, 1.0
    %v57 = vadd.f32 %v51, 1.0
    %v58 = vadd.f32 %v53, 1.0
    %v59 = vadd.f32 %v55, 1.0
    %v60 = vrcp.pop %v56
    %v61 = vmul.f32 1.0, %v60
    %v62 = vrcp.pop %v57
    %v63 = vmul.f32 1.0, %v62
    %v64 = vrcp.pop %v58
    %v65 = vmul.f32 1.0, %v64
    %v66 = vrcp.pop %v59
    %v67 = vmul.f32 1.0, %v66
    %v68 = vld [vmem:[#allocation6] sm:$0xff]
    %v69 = vld [vmem:[#allocation6 + $0x8] sm:$0xff]
    %v70 = vld [vmem:[#allocation6 + $0x10] sm:$0xff]
    %v71 = vld [vmem:[#allocation6 + $0x18] sm:$0xff]
    %vm72 = vcmp.gt.f32.partialorder %v68, 0.0
    %vm73 = vcmp.gt.f32.partialorder %v69, 0.0
    %vm74 = vcmp.gt.f32.partialorder %v70, 0.0
    %vm75 = vcmp.gt.f32.partialorder %v71, 0.0
    %v76 = vsel %vm72, 1, 0
    %v77 = vsel %vm73, 1, 0
    %v78 = vsel %vm74, 1, 0
    %v79 = vsel %vm75, 1, 0
    %v80 = vcvt.s32.f32 %v76
    %v81 = vcvt.s32.f32 %v77
    %v82 = vcvt.s32.f32 %v78
    %v83 = vcvt.s32.f32 %v79
    %vm84 = vcmp.gt.f32.partialorder %v61, 0.0
    %vm85 = vcmp.gt.f32.partialorder %v63, 0.0
    %vm86 = vcmp.gt.f32.partialorder %v65, 0.0
    %vm87 = vcmp.gt.f32.partialorder %v67, 0.0
    %v88 = vsel %vm84, 1, 0
    %v89 = vsel %vm85, 1, 0
    %v90 = vsel %vm86, 1, 0
    %v91 = vsel %vm87, 1, 0
    %v92 = vcvt.s32.f32 %v88
    %v93 = vcvt.s32.f32 %v89
    %v94 = vcvt.s32.f32 %v90
    %v95 = vcvt.s32.f32 %v91
    %vm96 = vcmask 162816
    %97 = vst.msk [vmem:[#allocation2] sm:$0xff] %vm96, 1.0
    %98 = vst.msk [vmem:[#allocation2 + $0x8] sm:$0xff] %vm96, 1.0
    %vm99 = vcmask 158720
    %100 = vst.msk [vmem:[#allocation2 + $0x10] sm:$0xf] %vm99, 1.0
    %101 = vst.msk [vmem:[#allocation2 + $0x18] sm:$0xff] %vm96, 1.0
    %102 = vst.msk [vmem:[#allocation2 + $0x20] sm:$0xff] %vm96, 1.0
    %103 = vst.msk [vmem:[#allocation2 + $0x28] sm:$0xf] %vm99, 1.0
    %v104 = vsub.f32 1.0, %v80
    %v105 = vsub.f32 1.0, %v81
    %v106 = vsub.f32 1.0, %v82
    %v107 = vsub.f32 1.0, %v83
    %112 = vrot.lane.b32.xlu0 %v104, 2
    %v113 = vpop.permute.xlu0 %112
    %114 = vrot.lane.b32.xlu0 %v105, 2
    %v115 = vpop.permute.xlu0 %114
    %116 = vrot.lane.b32.xlu0 %v106, 2
    %v117 = vpop.permute.xlu0 %116
    %118 = vrot.lane.b32.xlu0 %v107, 2
    %v119 = vpop.permute.xlu0 %118
    %vm124 = vcmask 146448
    %125 = vst.msk [vmem:[#allocation2 + $0x2] sm:$0xff] %vm124, %v113
    %126 = vst.msk [vmem:[#allocation2 + $0xa] sm:$0xff] %vm124, %v115
    %127 = vst.msk [vmem:[#allocation2 + $0x1a] sm:$0xff] %vm124, %v117
    %128 = vst.msk [vmem:[#allocation2 + $0x22] sm:$0xff] %vm124, %v119
    %v129 = vld [vmem:[#allocation2] sm:$0xff]
    %v130 = vld [vmem:[#allocation2 + $0x8] sm:$0xff]
    %v131 = vld [vmem:[#allocation2 + $0x10] sm:$0xf]
    %v132 = vld [vmem:[#allocation2 + $0x18] sm:$0xff]
    %v133 = vld [vmem:[#allocation2 + $0x20] sm:$0xff]
    %v134 = vld [vmem:[#allocation2 + $0x28] sm:$0xf]
    %141 = vrot.lane.b32.xlu0 %v129, 127
    %v142 = vpop.permute.xlu0 %141
    %143 = vrot.lane.b32.xlu0 %v130, 127
    %v144 = vpop.permute.xlu0 %143
    %145 = vrot.lane.b32.xlu0 %v131, 127
    %v146 = vpop.permute.xlu0 %145
    %147 = vrot.lane.b32.xlu0 %v132, 127
    %v148 = vpop.permute.xlu0 %147
    %149 = vrot.lane.b32.xlu0 %v133, 127
    %v150 = vpop.permute.xlu0 %149
    %151 = vrot.lane.b32.xlu0 %v134, 127
    %v152 = vpop.permute.xlu0 %151
    %v159 = vadd.f32 %v129, %v142
    %v160 = vadd.f32 %v130, %v144
    %v161 = vadd.f32 %v131, %v146
    %v162 = vadd.f32 %v132, %v148
    %v163 = vadd.f32 %v133, %v150
    %v164 = vadd.f32 %v134, %v152
    %165 = vrot.lane.b32.xlu0 %v129, 126
    %v166 = vpop.permute.xlu0 %165
    %167 = vrot.lane.b32.xlu0 %v130, 126
    %v168 = vpop.permute.xlu0 %167
    %169 = vrot.lane.b32.xlu0 %v131, 126
    %v170 = vpop.permute.xlu0 %169
    %171 = vrot.lane.b32.xlu0 %v132, 126
    %v172 = vpop.permute.xlu0 %171
    %173 = vrot.lane.b32.xlu0 %v133, 126
    %v174 = vpop.permute.xlu0 %173
    %175 = vrot.lane.b32.xlu0 %v134, 126
    %v176 = vpop.permute.xlu0 %175
    %v183 = vadd.f32 %v159, %v166
    %v184 = vadd.f32 %v160, %v168
    %v185 = vadd.f32 %v161, %v170
    %v186 = vadd.f32 %v162, %v172
    %v187 = vadd.f32 %v163, %v174
    %v188 = vadd.f32 %v164, %v176
    %189 = vrot.lane.b32.xlu0 %v129, 125
    %v190 = vpop.permute.xlu0 %189
    %191 = vrot.lane.b32.xlu0 %v130, 125
    %v192 = vpop.permute.xlu0 %191
    %193 = vrot.lane.b32.xlu0 %v131, 125
    %v194 = vpop.permute.xlu0 %193
    %195 = vrot.lane.b32.xlu0 %v132, 125
    %v196 = vpop.permute.xlu0 %195
    %197 = vrot.lane.b32.xlu0 %v133, 125
    %v198 = vpop.permute.xlu0 %197
    %199 = vrot.lane.b32.xlu0 %v134, 125
    %v200 = vpop.permute.xlu0 %199
    %v207 = vadd.f32 %v183, %v190
    %v208 = vadd.f32 %v184, %v192
    %v209 = vadd.f32 %v185, %v194
    %v210 = vadd.f32 %v186, %v196
    %v211 = vadd.f32 %v187, %v198
    %v212 = vadd.f32 %v188, %v200
    %213 = vrot.lane.b32.xlu0 %v129, 124
    %v214 = vpop.permute.xlu0 %213
    %215 = vrot.lane.b32.xlu0 %v130, 124
    %v216 = vpop.permute.xlu0 %215
    %217 = vrot.lane.b32.xlu0 %v131, 124
    %v218 = vpop.permute.xlu0 %217
    %219 = vrot.lane.b32.xlu0 %v132, 124
    %v220 = vpop.permute.xlu0 %219
    %221 = vrot.lane.b32.xlu0 %v133, 124
    %v222 = vpop.permute.xlu0 %221
    %223 = vrot.lane.b32.xlu0 %v134, 124
    %v224 = vpop.permute.xlu0 %223
    %v231 = vadd.f32 %v207, %v214
    %v232 = vadd.f32 %v208, %v216
    %v233 = vadd.f32 %v209, %v218
    %v234 = vadd.f32 %v210, %v220
    %v235 = vadd.f32 %v211, %v222
    %v236 = vadd.f32 %v212, %v224
    %vm237 = vcmask 1046528
    %v238 = vrot.slane %v129, 1
    %v239 = vrot.slane %v130, 1
    %v240 = vsel %vm237, %v238, %v239
    %v241 = vrot.slane %v131, 1
    %v242 = vsel %vm237, %v239, %v241
    %v243 = vrot.slane %v132, 1
    %v244 = vrot.slane %v133, 1
    %v245 = vsel %vm237, %v243, %v244
    %v246 = vrot.slane %v134, 1
    %v247 = vsel %vm237, %v244, %v246
    %v252 = vadd.f32 %v129, %v240
    %v253 = vadd.f32 %v130, %v242
    %v254 = vadd.f32 %v132, %v245
    %v255 = vadd.f32 %v133, %v247
    %vm256 = vcmask 1045504
    %v257 = vrot.slane %v129, 2
    %v258 = vrot.slane %v130, 2
    %v259 = vsel %vm256, %v257, %v258
    %v260 = vrot.slane %v131, 2
    %v261 = vsel %vm256, %v258, %v260
    %v262 = vrot.slane %v132, 2
    %v263 = vrot.slane %v133, 2
    %v264 = vsel %vm256, %v262, %v263
    %v265 = vrot.slane %v134, 2
    %v266 = vsel %vm256, %v263, %v265
    %v271 = vadd.f32 %v252, %v259
    %v272 = vadd.f32 %v253, %v261
    %v273 = vadd.f32 %v254, %v264
    %v274 = vadd.f32 %v255, %v266
    %vm275 = vcmask 1044480
    %v276 = vrot.slane %v129, 3
    %v277 = vrot.slane %v130, 3
    %v278 = vsel %vm275, %v276, %v277
    %v279 = vrot.slane %v131, 3
    %v280 = vsel %vm275, %v277, %v279
    %v281 = vrot.slane %v132, 3
    %v282 = vrot.slane %v133, 3
    %v283 = vsel %vm275, %v281, %v282
    %v284 = vrot.slane %v134, 3
    %v285 = vsel %vm275, %v282, %v284
    %v290 = vadd.f32 %v271, %v278
    %v291 = vadd.f32 %v272, %v280
    %v292 = vadd.f32 %v273, %v283
    %v293 = vadd.f32 %v274, %v285
    %vm294 = vcmask 1043456
    %v295 = vrot.slane %v129, 4
    %v296 = vrot.slane %v130, 4
    %v297 = vsel %vm294, %v295, %v296
    %v298 = vrot.slane %v131, 4
    %v299 = vsel %vm294, %v296, %v298
    %v300 = vrot.slane %v132, 4
    %v301 = vrot.slane %v133, 4
    %v302 = vsel %vm294, %v300, %v301
    %v303 = vrot.slane %v134, 4
    %v304 = vsel %vm294, %v301, %v303
    %v309 = vadd.f32 %v290, %v297
    %v310 = vadd.f32 %v291, %v299
    %v311 = vadd.f32 %v292, %v302
    %v312 = vadd.f32 %v293, %v304
    %v313 = vmul.f32 %v231, -1.5
    %v314 = vmul.f32 %v232, -1.5
    %v315 = vmul.f32 %v234, -1.5
    %v316 = vmul.f32 %v235, -1.5
    %v317 = vmul.f32 %v231, -0.375
    %v318 = vmul.f32 %v232, -0.375
    %v319 = vmul.f32 %v233, -0.375
    %v320 = vmul.f32 %v234, -0.375
    %v321 = vmul.f32 %v235, -0.375
    %v322 = vmul.f32 %v236, -0.375
    %v329 = vrot.slane %v317, 1
    %v330 = vrot.slane %v318, 1
    %v331 = vsel %vm237, %v329, %v330
    %v332 = vrot.slane %v319, 1
    %v333 = vsel %vm237, %v330, %v332
    %v334 = vrot.slane %v320, 1
    %v335 = vrot.slane %v321, 1
    %v336 = vsel %vm237, %v334, %v335
    %v337 = vrot.slane %v322, 1
    %v338 = vsel %vm237, %v335, %v337
    %v343 = vadd.f32 %v313, %v331
    %v344 = vadd.f32 %v314, %v333
    %v345 = vadd.f32 %v315, %v336
    %v346 = vadd.f32 %v316, %v338
    %v347 = vmul.f32 %v231, -0.0
    %v348 = vmul.f32 %v232, -0.0
    %v349 = vmul.f32 %v233, -0.0
    %v350 = vmul.f32 %v234, -0.0
    %v351 = vmul.f32 %v235, -0.0
    %v352 = vmul.f32 %v236, -0.0
    %v359 = vrot.slane %v347, 2
    %v360 = vrot.slane %v348, 2
    %v361 = vsel %vm256, %v359, %v360
    %v362 = vrot.slane %v349, 2
    %v363 = vsel %vm256, %v360, %v362
    %v364 = vrot.slane %v350, 2
    %v365 = vrot.slane %v351, 2
    %v366 = vsel %vm256, %v364, %v365
    %v367 = vrot.slane %v352, 2
    %v368 = vsel %vm256, %v365, %v367
    %v373 = vadd.f32 %v343, %v361
    %v374 = vadd.f32 %v344, %v363
    %v375 = vadd.f32 %v345, %v366
    %v376 = vadd.f32 %v346, %v368
    %v377 = vrot.slane %v317, 3
    %v378 = vrot.slane %v318, 3
    %v379 = vsel %vm275, %v377, %v378
    %v380 = vrot.slane %v319, 3
    %v381 = vsel %vm275, %v378, %v380
    %v382 = vrot.slane %v320, 3
    %v383 = vrot.slane %v321, 3
    %v384 = vsel %vm275, %v382, %v383
    %v385 = vrot.slane %v322, 3
    %v386 = vsel %vm275, %v383, %v385
    %v391 = vadd.f32 %v373, %v379
    %v392 = vadd.f32 %v374, %v381
    %v393 = vadd.f32 %v375, %v384
    %v394 = vadd.f32 %v376, %v386
    %v395 = vmul.f32 %v233, -1.5
    %v396 = vmul.f32 %v236, -1.5
    %v403 = vrot.slane %v313, 4
    %v404 = vrot.slane %v314, 4
    %v405 = vsel %vm294, %v403, %v404
    %v406 = vrot.slane %v395, 4
    %v407 = vsel %vm294, %v404, %v406
    %v408 = vrot.slane %v315, 4
    %v409 = vrot.slane %v316, 4
    %v410 = vsel %vm294, %v408, %v409
    %v411 = vrot.slane %v396, 4
    %v412 = vsel %vm294, %v409, %v411
    %v417 = vadd.f32 %v391, %v405
    %v418 = vadd.f32 %v392, %v407
    %v419 = vadd.f32 %v393, %v410
    %v420 = vadd.f32 %v394, %v412
    %v421 = vmul.f32 %v309, -1.5
    %v422 = vmul.f32 %v310, -1.5
    %v423 = vmul.f32 %v311, -1.5
    %v424 = vmul.f32 %v312, -1.5
    %v425 = vadd.f32 %v417, %v421
    %v426 = vadd.f32 %v418, %v422
    %v427 = vadd.f32 %v419, %v423
    %v428 = vadd.f32 %v420, %v424
    %v429 = vmul.f32 %v309, -0.375
    %v430 = vmul.f32 %v310, -0.375
    %v431 = vmul.f32 %v311, -0.375
    %v432 = vmul.f32 %v312, -0.375
    %437 = vrot.lane.b32.xlu0 %v429, 127
    %v438 = vpop.permute.xlu0 %437
    %439 = vrot.lane.b32.xlu0 %v430, 127
    %v440 = vpop.permute.xlu0 %439
    %441 = vrot.lane.b32.xlu0 %v431, 127
    %v442 = vpop.permute.xlu0 %441
    %443 = vrot.lane.b32.xlu0 %v432, 127
    %v444 = vpop.permute.xlu0 %443
    %v449 = vadd.f32 %v425, %v438
    %v450 = vadd.f32 %v426, %v440
    %v451 = vadd.f32 %v427, %v442
    %v452 = vadd.f32 %v428, %v444
    %v453 = vmul.f32 %v309, -0.0
    %v454 = vmul.f32 %v310, -0.0
    %v455 = vmul.f32 %v311, -0.0
    %v456 = vmul.f32 %v312, -0.0
    %461 = vrot.lane.b32.xlu0 %v453, 126
    %v462 = vpop.permute.xlu0 %461
    %463 = vrot.lane.b32.xlu0 %v454, 126
    %v464 = vpop.permute.xlu0 %463
    %465 = vrot.lane.b32.xlu0 %v455, 126
    %v466 = vpop.permute.xlu0 %465
    %467 = vrot.lane.b32.xlu0 %v456, 126
    %v468 = vpop.permute.xlu0 %467
    %v473 = vadd.f32 %v449, %v462
    %v474 = vadd.f32 %v450, %v464
    %v475 = vadd.f32 %v451, %v466
    %v476 = vadd.f32 %v452, %v468
    %477 = vrot.lane.b32.xlu0 %v429, 125
    %v478 = vpop.permute.xlu0 %477
    %479 = vrot.lane.b32.xlu0 %v430, 125
    %v480 = vpop.permute.xlu0 %479
    %481 = vrot.lane.b32.xlu0 %v431, 125
    %v482 = vpop.permute.xlu0 %481
    %483 = vrot.lane.b32.xlu0 %v432, 125
    %v484 = vpop.permute.xlu0 %483
    %v489 = vadd.f32 %v473, %v478
    %v490 = vadd.f32 %v474, %v480
    %v491 = vadd.f32 %v475, %v482
    %v492 = vadd.f32 %v476, %v484
    %497 = vrot.lane.b32.xlu0 %v421, 124
    %v498 = vpop.permute.xlu0 %497
    %499 = vrot.lane.b32.xlu0 %v422, 124
    %v500 = vpop.permute.xlu0 %499
    %501 = vrot.lane.b32.xlu0 %v423, 124
    %v502 = vpop.permute.xlu0 %501
    %503 = vrot.lane.b32.xlu0 %v424, 124
    %v504 = vpop.permute.xlu0 %503
    %v509 = vadd.f32 %v489, %v498
    %v510 = vadd.f32 %v490, %v500
    %v511 = vadd.f32 %v491, %v502
    %v512 = vadd.f32 %v492, %v504
    %v513 = vmax.f32 %v509, 0.0
    %v514 = vmax.f32 %v510, 0.0
    %v515 = vmax.f32 %v511, 0.0
    %v516 = vmax.f32 %v512, 0.0
    %v517 = vsub.f32 1.0, %v92
    %v518 = vsub.f32 1.0, %v93
    %v519 = vsub.f32 1.0, %v94
    %v520 = vsub.f32 1.0, %v95
    %521 = vst.msk [vmem:[#allocation2] sm:$0xff] %vm96, 1.0
    %522 = vst.msk [vmem:[#allocation2 + $0x8] sm:$0xff] %vm96, 1.0
    %523 = vst.msk [vmem:[#allocation2 + $0x10] sm:$0xf] %vm99, 1.0
    %524 = vst.msk [vmem:[#allocation2 + $0x18] sm:$0xff] %vm96, 1.0
    %525 = vst.msk [vmem:[#allocation2 + $0x20] sm:$0xff] %vm96, 1.0
    %526 = vst.msk [vmem:[#allocation2 + $0x28] sm:$0xf] %vm99, 1.0
    %v527 = vsub.f32 1.0, %v517
    %v528 = vsub.f32 1.0, %v518
    %v529 = vsub.f32 1.0, %v519
    %v530 = vsub.f32 1.0, %v520
    %535 = vrot.lane.b32.xlu0 %v527, 2
    %v536 = vpop.permute.xlu0 %535
    %537 = vrot.lane.b32.xlu0 %v528, 2
    %v538 = vpop.permute.xlu0 %537
    %539 = vrot.lane.b32.xlu0 %v529, 2
    %v540 = vpop.permute.xlu0 %539
    %541 = vrot.lane.b32.xlu0 %v530, 2
    %v542 = vpop.permute.xlu0 %541
    %547 = vst.msk [vmem:[#allocation2 + $0x2] sm:$0xff] %vm124, %v536
    %548 = vst.msk [vmem:[#allocation2 + $0xa] sm:$0xff] %vm124, %v538
    %549 = vst.msk [vmem:[#allocation2 + $0x1a] sm:$0xff] %vm124, %v540
    %550 = vst.msk [vmem:[#allocation2 + $0x22] sm:$0xff] %vm124, %v542
    %v551 = vld [vmem:[#allocation2] sm:$0xff]
    %v552 = vld [vmem:[#allocation2 + $0x8] sm:$0xff]
    %v553 = vld [vmem:[#allocation2 + $0x10] sm:$0xf]
    %v554 = vld [vmem:[#allocation2 + $0x18] sm:$0xff]
    %v555 = vld [vmem:[#allocation2 + $0x20] sm:$0xff]
    %v556 = vld [vmem:[#allocation2 + $0x28] sm:$0xf]
    %563 = vrot.lane.b32.xlu0 %v551, 127
    %v564 = vpop.permute.xlu0 %563
    %565 = vrot.lane.b32.xlu0 %v552, 127
    %v566 = vpop.permute.xlu0 %565
    %567 = vrot.lane.b32.xlu0 %v553, 127
    %v568 = vpop.permute.xlu0 %567
    %569 = vrot.lane.b32.xlu0 %v554, 127
    %v570 = vpop.permute.xlu0 %569
    %571 = vrot.lane.b32.xlu0 %v555, 127
    %v572 = vpop.permute.xlu0 %571
    %573 = vrot.lane.b32.xlu0 %v556, 127
    %v574 = vpop.permute.xlu0 %573
    %v581 = vadd.f32 %v551, %v564
    %v582 = vadd.f32 %v552, %v566
    %v583 = vadd.f32 %v553, %v568
    %v584 = vadd.f32 %v554, %v570
    %v585 = vadd.f32 %v555, %v572
    %v586 = vadd.f32 %v556, %v574
    %587 = vrot.lane.b32.xlu0 %v551, 126
    %v588 = vpop.permute.xlu0 %587
    %589 = vrot.lane.b32.xlu0 %v552, 126
    %v590 = vpop.permute.xlu0 %589
    %591 = vrot.lane.b32.xlu0 %v553, 126
    %v592 = vpop.permute.xlu0 %591
    %593 = vrot.lane.b32.xlu0 %v554, 126
    %v594 = vpop.permute.xlu0 %593
    %595 = vrot.lane.b32.xlu0 %v555, 126
    %v596 = vpop.permute.xlu0 %595
    %597 = vrot.lane.b32.xlu0 %v556, 126
    %v598 = vpop.permute.xlu0 %597
    %v605 = vadd.f32 %v581, %v588
    %v606 = vadd.f32 %v582, %v590
    %v607 = vadd.f32 %v583, %v592
    %v608 = vadd.f32 %v584, %v594
    %v609 = vadd.f32 %v585, %v596
    %v610 = vadd.f32 %v586, %v598
    %611 = vrot.lane.b32.xlu0 %v551, 125
    %v612 = vpop.permute.xlu0 %611
    %613 = vrot.lane.b32.xlu0 %v552, 125
    %v614 = vpop.permute.xlu0 %613
    %615 = vrot.lane.b32.xlu0 %v553, 125
    %v616 = vpop.permute.xlu0 %615
    %617 = vrot.lane.b32.xlu0 %v554, 125
    %v618 = vpop.permute.xlu0 %617
    %619 = vrot.lane.b32.xlu0 %v555, 125
    %v620 = vpop.permute.xlu0 %619
    %621 = vrot.lane.b32.xlu0 %v556, 125
    %v622 = vpop.permute.xlu0 %621
    %v629 = vadd.f32 %v605, %v612
    %v630 = vadd.f32 %v606, %v614
    %v631 = vadd.f32 %v607, %v616
    %v632 = vadd.f32 %v608, %v618
    %v633 = vadd.f32 %v609, %v620
    %v634 = vadd.f32 %v610, %v622
    %635 = vrot.lane.b32.xlu0 %v551, 124
    %v636 = vpop.permute.xlu0 %635
    %637 = vrot.lane.b32.xlu0 %v552, 124
    %v638 = vpop.permute.xlu0 %637
    %639 = vrot.lane.b32.xlu0 %v553, 124
    %v640 = vpop.permute.xlu0 %639
    %641 = vrot.lane.b32.xlu0 %v554, 124
    %v642 = vpop.permute.xlu0 %641
    %643 = vrot.lane.b32.xlu0 %v555, 124
    %v644 = vpop.permute.xlu0 %643
    %645 = vrot.lane.b32.xlu0 %v556, 124
    %v646 = vpop.permute.xlu0 %645
    %v653 = vadd.f32 %v629, %v636
    %v654 = vadd.f32 %v630, %v638
    %v655 = vadd.f32 %v631, %v640
    %v656 = vadd.f32 %v632, %v642
    %v657 = vadd.f32 %v633, %v644
    %v658 = vadd.f32 %v634, %v646
    %v659 = vrot.slane %v551, 1
    %v660 = vrot.slane %v552, 1
    %v661 = vsel %vm237, %v659, %v660
    %v662 = vrot.slane %v553, 1
    %v663 = vsel %vm237, %v660, %v662
    %v664 = vrot.slane %v554, 1
    %v665 = vrot.slane %v555, 1
    %v666 = vsel %vm237, %v664, %v665
    %v667 = vrot.slane %v556, 1
    %v668 = vsel %vm237, %v665, %v667
    %v673 = vadd.f32 %v551, %v661
    %v674 = vadd.f32 %v552, %v663
    %v675 = vadd.f32 %v554, %v666
    %v676 = vadd.f32 %v555, %v668
    %v677 = vrot.slane %v551, 2
    %v678 = vrot.slane %v552, 2
    %v679 = vsel %vm256, %v677, %v678
    %v680 = vrot.slane %v553, 2
    %v681 = vsel %vm256, %v678, %v680
    %v682 = vrot.slane %v554, 2
    %v683 = vrot.slane %v555, 2
    %v684 = vsel %vm256, %v682, %v683
    %v685 = vrot.slane %v556, 2
    %v686 = vsel %vm256, %v683, %v685
    %v691 = vadd.f32 %v673, %v679
    %v692 = vadd.f32 %v674, %v681
    %v693 = vadd.f32 %v675, %v684
    %v694 = vadd.f32 %v676, %v686
    %v695 = vrot.slane %v551, 3
    %v696 = vrot.slane %v552, 3
    %v697 = vsel %vm275, %v695, %v696
    %v698 = vrot.slane %v553, 3
    %v699 = vsel %vm275, %v696, %v698
    %v700 = vrot.slane %v554, 3
    %v701 = vrot.slane %v555, 3
    %v702 = vsel %vm275, %v700, %v701
    %v703 = vrot.slane %v556, 3
    %v704 = vsel %vm275, %v701, %v703
    %v709 = vadd.f32 %v691, %v697
    %v710 = vadd.f32 %v692, %v699
    %v711 = vadd.f32 %v693, %v702
    %v712 = vadd.f32 %v694, %v704
    %v713 = vrot.slane %v551, 4
    %v714 = vrot.slane %v552, 4
    %v715 = vsel %vm294, %v713, %v714
    %v716 = vrot.slane %v553, 4
    %v717 = vsel %vm294, %v714, %v716
    %v718 = vrot.slane %v554, 4
    %v719 = vrot.slane %v555, 4
    %v720 = vsel %vm294, %v718, %v719
    %v721 = vrot.slane %v556, 4
    %v722 = vsel %vm294, %v719, %v721
    %v727 = vadd.f32 %v709, %v715
    %v728 = vadd.f32 %v710, %v717
    %v729 = vadd.f32 %v711, %v720
    %v730 = vadd.f32 %v712, %v722
    %v731 = vmul.f32 %v653, -1.5
    %v732 = vmul.f32 %v654, -1.5
    %v733 = vmul.f32 %v656, -1.5
    %v734 = vmul.f32 %v657, -1.5
    %v735 = vmul.f32 %v653, -0.375
    %v736 = vmul.f32 %v654, -0.375
    %v737 = vmul.f32 %v655, -0.375
    %v738 = vmul.f32 %v656, -0.375
    %v739 = vmul.f32 %v657, -0.375
    %v740 = vmul.f32 %v658, -0.375
    %v747 = vrot.slane %v735, 1
    %v748 = vrot.slane %v736, 1
    %v749 = vsel %vm237, %v747, %v748
    %v750 = vrot.slane %v737, 1
    %v751 = vsel %vm237, %v748, %v750
    %v752 = vrot.slane %v738, 1
    %v753 = vrot.slane %v739, 1
    %v754 = vsel %vm237, %v752, %v753
    %v755 = vrot.slane %v740, 1
    %v756 = vsel %vm237, %v753, %v755
    %v761 = vadd.f32 %v731, %v749
    %v762 = vadd.f32 %v732, %v751
    %v763 = vadd.f32 %v733, %v754
    %v764 = vadd.f32 %v734, %v756
    %v765 = vmul.f32 %v653, -0.0
    %v766 = vmul.f32 %v654, -0.0
    %v767 = vmul.f32 %v655, -0.0
    %v768 = vmul.f32 %v656, -0.0
    %v769 = vmul.f32 %v657, -0.0
    %v770 = vmul.f32 %v658, -0.0
    %v777 = vrot.slane %v765, 2
    %v778 = vrot.slane %v766, 2
    %v779 = vsel %vm256, %v777, %v778
    %v780 = vrot.slane %v767, 2
    %v781 = vsel %vm256, %v778, %v780
    %v782 = vrot.slane %v768, 2
    %v783 = vrot.slane %v769, 2
    %v784 = vsel %vm256, %v782, %v783
    %v785 = vrot.slane %v770, 2
    %v786 = vsel %vm256, %v783, %v785
    %v791 = vadd.f32 %v761, %v779
    %v792 = vadd.f32 %v762, %v781
    %v793 = vadd.f32 %v763, %v784
    %v794 = vadd.f32 %v764, %v786
    %v795 = vrot.slane %v735, 3
    %v796 = vrot.slane %v736, 3
    %v797 = vsel %vm275, %v795, %v796
    %v798 = vrot.slane %v737, 3
    %v799 = vsel %vm275, %v796, %v798
    %v800 = vrot.slane %v738, 3
    %v801 = vrot.slane %v739, 3
    %v802 = vsel %vm275, %v800, %v801
    %v803 = vrot.slane %v740, 3
    %v804 = vsel %vm275, %v801, %v803
    %v809 = vadd.f32 %v791, %v797
    %v810 = vadd.f32 %v792, %v799
    %v811 = vadd.f32 %v793, %v802
    %v812 = vadd.f32 %v794, %v804
    %v813 = vmul.f32 %v655, -1.5
    %v814 = vmul.f32 %v658, -1.5
    %v821 = vrot.slane %v731, 4
    %v822 = vrot.slane %v732, 4
    %v823 = vsel %vm294, %v821, %v822
    %v824 = vrot.slane %v813, 4
    %v825 = vsel %vm294, %v822, %v824
    %v826 = vrot.slane %v733, 4
    %v827 = vrot.slane %v734, 4
    %v828 = vsel %vm294, %v826, %v827
    %v829 = vrot.slane %v814, 4
    %v830 = vsel %vm294, %v827, %v829
    %v835 = vadd.f32 %v809, %v823
    %v836 = vadd.f32 %v810, %v825
    %v837 = vadd.f32 %v811, %v828
    %v838 = vadd.f32 %v812, %v830
    %v839 = vmul.f32 %v727, -1.5
    %v840 = vmul.f32 %v728, -1.5
    %v841 = vmul.f32 %v729, -1.5
    %v842 = vmul.f32 %v730, -1.5
    %v843 = vadd.f32 %v835, %v839
    %v844 = vadd.f32 %v836, %v840
    %v845 = vadd.f32 %v837, %v841
    %v846 = vadd.f32 %v838, %v842
    %v847 = vmul.f32 %v727, -0.375
    %v848 = vmul.f32 %v728, -0.375
    %v849 = vmul.f32 %v729, -0.375
    %v850 = vmul.f32 %v730, -0.375
    %855 = vrot.lane.b32.xlu0 %v847, 127
    %v856 = vpop.permute.xlu0 %855
    %857 = vrot.lane.b32.xlu0 %v848, 127
    %v858 = vpop.permute.xlu0 %857
    %859 = vrot.lane.b32.xlu0 %v849, 127
    %v860 = vpop.permute.xlu0 %859
    %861 = vrot.lane.b32.xlu0 %v850, 127
    %v862 = vpop.permute.xlu0 %861
    %v867 = vadd.f32 %v843, %v856
    %v868 = vadd.f32 %v844, %v858
    %v869 = vadd.f32 %v845, %v860
    %v870 = vadd.f32 %v846, %v862
    %v871 = vmul.f32 %v727, -0.0
    %v872 = vmul.f32 %v728, -0.0
    %v873 = vmul.f32 %v729, -0.0
    %v874 = vmul.f32 %v730, -0.0
    %879 = vrot.lane.b32.xlu0 %v871, 126
    %v880 = vpop.permute.xlu0 %879
    %881 = vrot.lane.b32.xlu0 %v872, 126
    %v882 = vpop.permute.xlu0 %881
    %883 = vrot.lane.b32.xlu0 %v873, 126
    %v884 = vpop.permute.xlu0 %883
    %885 = vrot.lane.b32.xlu0 %v874, 126
    %v886 = vpop.permute.xlu0 %885
    %v891 = vadd.f32 %v867, %v880
    %v892 = vadd.f32 %v868, %v882
    %v893 = vadd.f32 %v869, %v884
    %v894 = vadd.f32 %v870, %v886
    %895 = vrot.lane.b32.xlu0 %v847, 125
    %v896 = vpop.permute.xlu0 %895
    %897 = vrot.lane.b32.xlu0 %v848, 125
    %v898 = vpop.permute.xlu0 %897
    %899 = vrot.lane.b32.xlu0 %v849, 125
    %v900 = vpop.permute.xlu0 %899
    %901 = vrot.lane.b32.xlu0 %v850, 125
    %v902 = vpop.permute.xlu0 %901
    %v907 = vadd.f32 %v891, %v896
    %v908 = vadd.f32 %v892, %v898
    %v909 = vadd.f32 %v893, %v900
    %v910 = vadd.f32 %v894, %v902
    %915 = vrot.lane.b32.xlu0 %v839, 124
    %v916 = vpop.permute.xlu0 %915
    %917 = vrot.lane.b32.xlu0 %v840, 124
    %v918 = vpop.permute.xlu0 %917
    %919 = vrot.lane.b32.xlu0 %v841, 124
    %v920 = vpop.permute.xlu0 %919
    %921 = vrot.lane.b32.xlu0 %v842, 124
    %v922 = vpop.permute.xlu0 %921
    %v927 = vadd.f32 %v907, %v916
    %v928 = vadd.f32 %v908, %v918
    %v929 = vadd.f32 %v909, %v920
    %v930 = vadd.f32 %v910, %v922
    %v931 = vmax.f32 %v927, 0.0
    %v932 = vmax.f32 %v928, 0.0
    %v933 = vmax.f32 %v929, 0.0
    %v934 = vmax.f32 %v930, 0.0
    %v935 = vmax.f32 %v513, %v515
    %v936 = vmax.f32 %v514, %v516
    %v937 = vmul.f32 %v61, %v935
    %v938 = vmul.f32 %v63, %v936
    %v939 = vmul.f32 %v65, %v935
    %v940 = vmul.f32 %v67, %v936
    %v941 = vmul.f32 %v80, %v931
    %v942 = vmul.f32 %v81, %v932
    %v943 = vmul.f32 %v82, %v933
    %v944 = vmul.f32 %v83, %v934
    %vm945 = vcmask 130048
    %v946 = vsel %vm945, %v937, -inf
    %v947 = vsel %vm945, %v938, -inf
    %v948 = vmax.f32 %v946, %v947
    %949 = vmax.xlane.f32.xlu0 %v948
    %v950 = vpop.xlane.xlu0 %949
    %v951 = vrot.slane %v950, 4
    %v952 = vmax.f32 %v950, %v951
    %v953 = vrot.slane %v952, 2
    %v954 = vmax.f32 %v952, %v953
    %v955 = vrot.slane %v954, 1
    %v956 = vmax.f32 %v954, %v955
    %s957 = vtos %v956
    %s958 = sadd.f32 %s957, 0.0
    %v959 = vsel %vm945, %v941, -inf
    %v960 = vsel %vm945, %v942, -inf
    %v961 = vmax.f32 %v959, %v960
    %962 = vmax.xlane.f32.xlu0 %v961
    %v963 = vpop.xlane.xlu0 %962
    %v964 = vrot.slane %v963, 4
    %v965 = vmax.f32 %v963, %v964
    %v966 = vrot.slane %v965, 2
    %v967 = vmax.f32 %v965, %v966
    %v968 = vrot.slane %v967, 1
    %v969 = vmax.f32 %v967, %v968
    %s970 = vtos %v969
    %s971 = sadd.f32 %s958, %s970
    %v972 = vsel %vm945, %v939, -inf
    %v973 = vsel %vm945, %v940, -inf
    %v974 = vmax.f32 %v972, %v973
    %975 = vmax.xlane.f32.xlu0 %v974
    %v976 = vpop.xlane.xlu0 %975
    %v977 = vrot.slane %v976, 4
    %v978 = vmax.f32 %v976, %v977
    %v979 = vrot.slane %v978, 2
    %v980 = vmax.f32 %v978, %v979
    %v981 = vrot.slane %v980, 1
    %v982 = vmax.f32 %v980, %v981
    %s983 = vtos %v982
    %s984 = sadd.f32 %s971, %s983
    %v985 = vsel %vm945, %v943, -inf
    %v986 = vsel %vm945, %v944, -inf
    %v987 = vmax.f32 %v985, %v986
    %988 = vmax.xlane.f32.xlu0 %v987
    %v989 = vpop.xlane.xlu0 %988
    %v990 = vrot.slane %v989, 4
    %v991 = vmax.f32 %v989, %v990
    %v992 = vrot.slane %v991, 2
    %v993 = vmax.f32 %v991, %v992
    %v994 = vrot.slane %v993, 1
    %v995 = vmax.f32 %v993, %v994
    %s996 = vtos %v995
    %s997 = sadd.f32 %s984, %s996
    %v998 = vrcp.pop 2.0
    %s999 = vtos %v998
    %s1000 = smul.f32 %s997, %s999
    %s1001 = scalar_lea.smem [#allocation8], 0
    %1002 = sst [smem:[%s1001]] %s1000
    // Predicated region
    $region18: #{auto_hausdorff_dt_loss.1} parent=1 // pred_check
      _
    $region19: #{auto_hausdorff_dt_loss.1} parent=1 // pred_check_branch
      %1004 = sbr.rel (0) target = $region21
    $region20: #{auto_hausdorff_dt_loss.1} parent=1 // pred_region
      %s1006 = ssub.s32 16, 16
      %1007 = vsyncadd [#allocation5], %s1006
      %1010 = dma.smem_to_hbm [#allocation8], 16, %s2, [#allocation5]
    $region21: #{auto_hausdorff_dt_loss.1} parent=1 // pred_fallthru
      _
    // Predicated region
    $region22: #{auto_hausdorff_dt_loss.1} parent=1 // pred_check
      _
    $region23: #{auto_hausdorff_dt_loss.1} parent=1 // pred_check_branch
      %1012 = sbr.rel (0) target = $region25
    $region24: #{auto_hausdorff_dt_loss.1} parent=1 // pred_region
      %1013 = dma.done [#allocation5], 16
    $region25: #{auto_hausdorff_dt_loss.1} parent=1 // pred_fallthru
      _
    %1014 = sfence
    %1015 = vsyncpa [#allocation4], 1
    %1016 = vsyncpa [#allocation7], 1
    %1017 = vsyncpa [#allocation5], 1

</llo_original>
